<compile_context>
chip_gen: v6e
topology: v6e:2x2x1
jax: 0.10.0
libtpu: 0.0.40
codegen_flags: <defaults>
</compile_context>

<pallas_src>
import functools

import jax
import jax.numpy as jnp
from jax.experimental import pallas as pl
from jax.experimental.pallas import tpu as pltpu


def _affine_kernel(x_ref, a_ref, b_ref, o_ref):
    # Fused per-row / per-lane affine: out = x * a + b  (a = scale, b = scale*loc)
    o_ref[...] = x_ref[...] * a_ref[...] + b_ref[...]


def _pick_tile(dim, unit, cap):
    """Largest divisor of `dim` that is a multiple of `unit` and <= cap.

    Falls back to the full extent (block == array dim, always legal) when `dim`
    is not a multiple of `unit`.
    """
    if dim <= 0 or dim % unit != 0:
        return dim
    t = min(cap, dim)
    t -= t % unit
    t = max(t, unit)
    while t > unit and dim % t != 0:
        t -= unit
    return t


def _tiled_affine(x2, a2, b2, *, row_param):
    """out[r, l] = x2[r, l] * a + b, tiled over a 2-D grid.

    x2: (R, L).
    row_param=True : a2/b2 have shape (R, 1) (broadcast along lanes).
    row_param=False: a2/b2 have shape (1, L) (broadcast along sublanes).
    """
    R, L = x2.shape
    itemsize = jnp.dtype(x2.dtype).itemsize

    # Lane tile: large multiple of 128 (unmasked, lane-dense loads/stores).
    tile_l = _pick_tile(L, 128, 2048)
    # Row tile: multiple of 8 sublanes, per-buffer budget ~2 MiB so the
    # double-buffered in + out pair stays well inside every default VMEM limit.
    row_cap = max(8, (2 * 1024 * 1024) // max(1, tile_l * itemsize))
    tile_r = _pick_tile(R, 8, min(256, row_cap))

    grid = (pl.cdiv(R, tile_r), pl.cdiv(L, tile_l))

    if row_param:
        p_spec = pl.BlockSpec((tile_r, 1), lambda i, j: (i, 0))
    else:
        p_spec = pl.BlockSpec((1, tile_l), lambda i, j: (0, j))

    return pl.pallas_call(
        _affine_kernel,
        out_shape=jax.ShapeDtypeStruct((R, L), x2.dtype),
        grid=grid,
        in_specs=[
            pl.BlockSpec((tile_r, tile_l), lambda i, j: (i, j)),
            p_spec,
            p_spec,
        ],
        out_specs=pl.BlockSpec((tile_r, tile_l), lambda i, j: (i, j)),
        compiler_params=pltpu.CompilerParams(
            dimension_semantics=("parallel", "parallel")),
        cost_estimate=pl.CostEstimate(
            flops=2 * R * L,
            transcendentals=0,
            bytes_accessed=2 * R * L * itemsize),
    )(x2, a2, b2)


@functools.partial(jax.jit, static_argnames=("logdet",))
def actnorm_forward(x, loc, scale, logdet=False):
    """ActNorm forward. x: (N, C, H, W) NCHW or (N, C). loc/scale: (1, C, 1, 1)."""
    # Fuse params: scale * (x + loc) == a * x + b with a = scale, b = scale * loc.
    a_c = scale.reshape(-1).astype(x.dtype)            # (C,)
    b_c = (scale * loc).reshape(-1).astype(x.dtype)    # (C,)

    if x.ndim == 2:
        # (N, C): channels live on the lane axis; params broadcast over rows.
        N, C = x.shape
        H = W = 1
        h = _tiled_affine(x, a_c[None, :], b_c[None, :], row_param=False)
    else:
        N, C, H, W = x.shape
        R, L = N * C, H * W
        # Free reshape of the contiguous NCHW buffer (no transpose, no extra
        # HBM passes). Row r = n*C + c uses channel c = r % C.
        x2 = x.reshape(R, L)
        a_r = jnp.broadcast_to(a_c[None, :], (N, C)).reshape(R, 1)
        b_r = jnp.broadcast_to(b_c[None, :], (N, C)).reshape(R, 1)
        h = _tiled_affine(x2, a_r, b_r, row_param=True).reshape(N, C, H, W)

    if logdet:
        # Parameter-only reduction (independent of x data) — plain-JAX glue.
        ld = (H * W) * jnp.sum(jnp.log(jnp.abs(scale)))
        ld = jnp.broadcast_to(ld, (N,)).astype(x.dtype)
        return h, ld
    return h


def _reference(x, loc, scale, logdet=False):
    squeeze = x.ndim == 2
    if squeeze:
        x = x[:, :, None, None]
    N, C, H, W = x.shape
    h = scale * (x + loc)
    if squeeze:
        h = h[:, :, 0, 0]
    if logdet:
        ld = (H * W) * jnp.sum(jnp.log(jnp.abs(scale)))
        return h, ld * jnp.ones((N,), dtype=x.dtype)
    return h


if __name__ == "__main__":
    key = jax.random.PRNGKey(0)
    k_x, k_loc, k_scale, k_x2 = jax.random.split(key, 4)

    N, C, H, W = 2, 4, 16, 16

    # Parameters: module __init__ gives loc=zeros(1,C,1,1), scale=ones(1,C,1,1).
    # Perturb them deterministically so the check is non-trivial.
    loc = jnp.zeros((1, C, 1, 1), jnp.float32) + 0.1 * jax.random.normal(k_loc, (1, C, 1, 1))
    scale = jnp.ones((1, C, 1, 1), jnp.float32) + 0.1 * jax.random.normal(k_scale, (1, C, 1, 1))

    # 4-D conv-style input (NCHW), with logdet.
    x = jax.random.normal(k_x, (N, C, H, W), jnp.float32)
    h, ld = actnorm_forward(x, loc, scale, logdet=True)
    jax.block_until_ready((h, ld))
    h_ref, ld_ref = _reference(x, loc, scale, logdet=True)
    assert jnp.allclose(h, h_ref, atol=1e-5, rtol=1e-5)
    assert jnp.allclose(ld, ld_ref, atol=1e-5, rtol=1e-5)

    # 2-D input path (squeeze branch).
    x2d = jax.random.normal(k_x2, (N, C), jnp.float32)
    h2 = actnorm_forward(x2d, loc, scale, logdet=False)
    jax.block_until_ready(h2)
    assert jnp.allclose(h2, _reference(x2d, loc, scale), atol=1e-5, rtol=1e-5)

    print("KERNEL_OK")
</pallas_src>

<mosaic_0001>
module attributes {stable_mosaic.version = 11 : i64} {
  func.func @_affine_kernel(%arg0: i32, %arg1: i32, %arg2: memref<8x256xf32, #tpu.memory_space<vmem>>, %arg3: memref<8x1xf32, #tpu.memory_space<vmem>>, %arg4: memref<8x1xf32, #tpu.memory_space<vmem>>, %arg5: memref<8x256xf32, #tpu.memory_space<vmem>>) attributes {dimension_semantics = [#tpu.dimension_semantics<parallel>, #tpu.dimension_semantics<parallel>], iteration_bounds = array<i64: 1, 1>, scalar_prefetch = 0 : i64, scratch_operands = 0 : i64, tpu.core_type = #tpu.core_type<tc>, window_params = [{transform_indices = @transform_0, window_bounds = array<i64: 8, 256>}, {transform_indices = @transform_1, window_bounds = array<i64: 8, 1>}, {transform_indices = @transform_2, window_bounds = array<i64: 8, 1>}, {transform_indices = @transform_3, window_bounds = array<i64: 8, 256>}]} {
    %c0 = arith.constant 0 : index
    %c0_0 = arith.constant 0 : index
    %0 = vector.load %arg2[%c0, %c0_0] : memref<8x256xf32, #tpu.memory_space<vmem>>, vector<8x256xf32>
    %c0_1 = arith.constant 0 : index
    %c0_2 = arith.constant 0 : index
    %1 = vector.load %arg3[%c0_1, %c0_2] : memref<8x1xf32, #tpu.memory_space<vmem>>, vector<8x1xf32>
    %2 = vector.broadcast %1 : vector<8x1xf32> to vector<8x256xf32>
    %3 = arith.mulf %0, %2 : vector<8x256xf32>
    %c0_3 = arith.constant 0 : index
    %c0_4 = arith.constant 0 : index
    %4 = vector.load %arg4[%c0_3, %c0_4] : memref<8x1xf32, #tpu.memory_space<vmem>>, vector<8x1xf32>
    %5 = vector.broadcast %4 : vector<8x1xf32> to vector<8x256xf32>
    %6 = arith.addf %3, %5 : vector<8x256xf32>
    %c0_5 = arith.constant 0 : index
    %c0_6 = arith.constant 0 : index
    %7 = vector.load %arg5[%c0_5, %c0_6] : memref<8x256xf32, #tpu.memory_space<vmem>>, vector<8x256xf32>
    tpu.vector_store %arg5[%c0_5, %c0_6], %6 {strides = array<i32>} : memref<8x256xf32, #tpu.memory_space<vmem>>, vector<8x256xf32>,
    return
  }
  func.func @transform_0(%arg0: i32, %arg1: i32) -> (i32, i32) {
    %c0_i32 = arith.constant 0 : i32
    return %arg0, %arg1 : i32, i32
  }
  func.func @transform_1(%arg0: i32, %arg1: i32) -> (i32, i32) {
    %c0_i32 = arith.constant 0 : i32
    %c0_i32_0 = arith.constant 0 : i32
    return %arg0, %c0_i32 : i32, i32
  }
  func.func @transform_2(%arg0: i32, %arg1: i32) -> (i32, i32) {
    %c0_i32 = arith.constant 0 : i32
    %c0_i32_0 = arith.constant 0 : i32
    return %arg0, %c0_i32 : i32, i32
  }
  func.func @transform_3(%arg0: i32, %arg1: i32) -> (i32, i32) {
    %c0_i32 = arith.constant 0 : i32
    return %arg0, %arg1 : i32, i32
  }
}

</mosaic_0001>

<llo_original>
// kernel: actnorm_forward.1
$region0: #{actnorm_forward.1}
  #allocation0 [shape = 'u32[]', space=smem, size = 0x4, offset = 0x4, fixed_abs, tag = 'smem constant byte address 0x4 - core index']
  #allocation1 [shape = 'u32[144,128]{1,0:T(1,128)}', space=vmem, size = 0x12000, scoped, tag = 'internal scratch']
  %s0 = inlined_call_operand.vmem [shape: f32[8,256], index: 0, kind: input, shape index: {}]
  %s1 = inlined_call_operand.vmem [shape: f32[8,1], index: 1, kind: input, shape index: {}]
  %s2 = inlined_call_operand.vmem [shape: f32[8,1], index: 2, kind: input, shape index: {}]
  %s3 = inlined_call_operand.vmem [shape: f32[8,256], index: 3, kind: output, shape index: {}]
  %s4 = sld [smem:[#allocation0]]
  $region22: #{actnorm_forward.1} parent=0
    _
  %s6 = ssub.s32 1, %s4
  %s7 = scalar_select 0, %s6, %s4
  // Predicated region
  $region2: #{actnorm_forward.1} parent=0 // pred_check
    _
  $region3: #{actnorm_forward.1} parent=0 // pred_check_branch
    %9 = sbr.rel (0) target = $region5
  $region4: #{actnorm_forward.1} parent=0 // pred_region
    _
  $region5: #{actnorm_forward.1} parent=0 // pred_fallthru
    _
  // Predicated region
  $region6: #{actnorm_forward.1} parent=0 // pred_check
    _
  $region7: #{actnorm_forward.1} parent=0 // pred_check_branch
    %11 = sbr.rel (0) target = $region9
  $region8: #{actnorm_forward.1} parent=0 // pred_region
    _
  $region9: #{actnorm_forward.1} parent=0 // pred_fallthru
    _
  // Predicated region
  $region10: #{actnorm_forward.1} parent=0 // pred_check
    _
  $region11: #{actnorm_forward.1} parent=0 // pred_check_branch
    %13 = sbr.rel (0) target = $region13
  $region12: #{actnorm_forward.1} parent=0 // pred_region
    _
  $region13: #{actnorm_forward.1} parent=0 // pred_fallthru
    _
  %v14 = vld [vmem:[%s0] sm:$0xff]
  %v15 = vld [vmem:[%s0 + $0x8] sm:$0xff]
  %v16 = vld [vmem:[%s1] sm:$0xff]
  %18 = vset.pattern.permute.xlu0 0
  %19 = vperm.xlu0 %18, %v16
  %v20 = vpop.permute.xlu0 %19
  %v22 = vmul.f32 %v14, %v20
  %v23 = vmul.f32 %v15, %v20
  %v24 = vld [vmem:[%s2] sm:$0xff]
  %26 = vset.pattern.permute.xlu0 0
  %27 = vperm.xlu0 %26, %v24
  %v28 = vpop.permute.xlu0 %27
  %v30 = vadd.f32 %v22, %v28
  %v31 = vadd.f32 %v23, %v28
  %32 = vst [vmem:[%s3] sm:$0xff] %v30
  %33 = vst [vmem:[%s3 + $0x8] sm:$0xff] %v31
  // Predicated region
  $region14: #{actnorm_forward.1} parent=0 // pred_check
    _
  $region15: #{actnorm_forward.1} parent=0 // pred_check_branch
    %35 = sbr.rel (0) target = $region17
  $region16: #{actnorm_forward.1} parent=0 // pred_region
    _
  $region17: #{actnorm_forward.1} parent=0 // pred_fallthru
    _
  // Predicated region
  $region18: #{actnorm_forward.1} parent=0 // pred_check
    _
  $region19: #{actnorm_forward.1} parent=0 // pred_check_branch
    %37 = sbr.rel (0) target = $region21
  $region20: #{actnorm_forward.1} parent=0 // pred_region
    _
  $region21: #{actnorm_forward.1} parent=0 // pred_fallthru
    _

</llo_original>
